<compile_context>
chip_gen: v5e
topology: v5e:2x2
jax: 0.10.0
libtpu: 0.0.40
codegen_flags: <defaults>
</compile_context>

<pallas_src>
import functools

import jax
import jax.numpy as jnp
from jax.experimental import pallas as pl
from jax.experimental.pallas import tpu as pltpu

EPS = 1e-6
LANES = 128
TARGET_ROWS = 4096          # 2 MiB f32 / 1 MiB bf16 per buffer
SINGLE_BLOCK_BYTES = 2 << 20  # below this, run the whole slab as one block


_BF16_EUP_CACHE = None


def _has_bf16_eup():
    """True on chips with a bf16 EUP (v6e / v7x); False elsewhere / unknown."""
    global _BF16_EUP_CACHE
    if _BF16_EUP_CACHE is None:
        try:
            kind = jax.devices()[0].device_kind.lower()
            _BF16_EUP_CACHE = any(tag in kind for tag in ("v6", "v7"))
        except Exception:  # pragma: no cover - be conservative
            _BF16_EUP_CACHE = False
    return _BF16_EUP_CACHE


def kumar_kernel(ab_ref, x_ref, o_ref, *, bf16_trans):
    # ab_ref: SMEM (2,) f32 -> POST-softplus alpha, beta
    # x_ref / o_ref: VMEM (block_rows, 128) tiles in the I/O dtype
    alpha = ab_ref[0]
    beta = ab_ref[1]

    xf = x_ref[...].astype(jnp.float32)
    xf = jnp.clip(xf, EPS, 1.0 - EPS)

    if bf16_trans:
        # bf16 I/O on v6e/v7x: the 4 transcendentals/element on the single EUP
        # slot are the binding resource; running them in bf16 roughly doubles
        # EUP throughput.  VPU ops (clip/mul/min/sub/casts) stay in f32 --
        # they are free filler against 4 VALU slots.  (Only used for bf16 I/O,
        # so the looser bf16 tolerance absorbs the extra rounding.)
        lx = jnp.log(xf.astype(jnp.bfloat16)).astype(jnp.float32)
        x_a = jnp.exp((alpha * lx).astype(jnp.bfloat16)).astype(jnp.float32)
        x_a = jnp.minimum(x_a, 1.0)
        one_m = 1.0 - x_a                       # exact-ish f32 subtraction
        lo = jnp.log(one_m.astype(jnp.bfloat16)).astype(jnp.float32)
        res = 1.0 - jnp.exp((beta * lo).astype(jnp.bfloat16)).astype(jnp.float32)
    else:
        # f32 chain (f32 I/O, or chips without a bf16 EUP e.g. v5e).
        lx = jnp.log(xf)                        # x in (0,1) so log is safe
        x_a = jnp.minimum(jnp.exp(alpha * lx), 1.0)
        # (1 - x_a) ** beta via log1p: if x_a rounds to 1, log1p -> -inf -> 1.0
        res = 1.0 - jnp.exp(beta * jnp.log1p(-x_a))

    o_ref[...] = res.astype(o_ref.dtype)


def kumar_forward(x, alpha_param, beta_param):
    """x: any-shape f32/bf16 array (e.g. NCHW). Returns same shape/dtype."""
    orig_shape = x.shape
    orig_dtype = x.dtype

    io_dtype = orig_dtype if orig_dtype in (jnp.float32, jnp.bfloat16) else jnp.float32
    xw = x if orig_dtype == io_dtype else x.astype(io_dtype)
    itemsize = jnp.dtype(io_dtype).itemsize
    min_rows = 16 if io_dtype == jnp.bfloat16 else 8   # native sublane tile

    # ---- lane-dense (rows, 128) view; reshape is free, pad/slice only when
    # the element count is not already a multiple of 128 ----
    n = xw.size
    n_pad = -(-n // LANES) * LANES
    padded = n_pad != n
    flat = xw.reshape(-1)
    if padded:
        flat = jnp.pad(flat, (0, n_pad - n), constant_values=0.5)
    rows = n_pad // LANES
    x2d = flat.reshape(rows, LANES)

    # post-softplus scalars, computed once outside the kernel
    ab = jax.nn.softplus(
        jnp.concatenate([jnp.reshape(alpha_param, (-1,))[:1],
                         jnp.reshape(beta_param, (-1,))[:1]]).astype(jnp.float32)
    )  # (2,)

    # ---- tile / grid selection ----
    total_bytes = rows * LANES * itemsize
    if total_bytes <= SINGLE_BLOCK_BYTES:
        # Small slab: one full-extent block (block == full array dims is
        # always legal).  Splitting only adds per-step overhead, and on
        # single-TC v5e/v6e it buys zero parallelism.
        block_rows = rows
        grid = (1,)
    else:
        # Large slab: blocks up to 4096 rows, but at least 4 grid steps so
        # each of v7x's 2 TensorCores gets >= 2 steps (keeps per-core DMA /
        # compute overlap).  On v5e/v6e the resulting >= ~0.5 MiB blocks stay
        # in the ~85%+ HBM-roofline band, so the extra steps cost ~nothing.
        quarter = -(-rows // 4)
        quarter = -(-quarter // min_rows) * min_rows
        block_rows = max(min_rows, min(TARGET_ROWS, quarter))
        grid = (pl.cdiv(rows, block_rows),)     # covers ragged tail

    bf16_trans = (io_dtype == jnp.bfloat16) and _has_bf16_eup()

    cost = pl.CostEstimate(
        flops=6 * n_pad,
        transcendentals=4 * n_pad,
        bytes_accessed=2 * n_pad * itemsize + 8,
    )

    out2d = pl.pallas_call(
        functools.partial(kumar_kernel, bf16_trans=bf16_trans),
        out_shape=jax.ShapeDtypeStruct((rows, LANES), io_dtype),
        grid=grid,
        in_specs=[
            pl.BlockSpec(memory_space=pltpu.MemorySpace.SMEM),      # alpha/beta
            pl.BlockSpec((block_rows, LANES), lambda i: (i, 0)),    # x tile
        ],
        out_specs=pl.BlockSpec((block_rows, LANES), lambda i: (i, 0)),
        compiler_params=pltpu.CompilerParams(
            dimension_semantics=("parallel",),
        ),
        cost_estimate=cost,
    )(ab, x2d)

    out_flat = out2d.reshape(-1)
    if padded:
        out_flat = out_flat[:n]
    out = out_flat.reshape(orig_shape)
    if out.dtype != orig_dtype:
        out = out.astype(orig_dtype)
    return out


def _ref_fn(x, alpha_param, beta_param):
    a = jax.nn.softplus(alpha_param.astype(jnp.float32)).reshape(-1)[0]
    b = jax.nn.softplus(beta_param.astype(jnp.float32)).reshape(-1)[0]
    xc = jnp.clip(x.astype(jnp.float32), EPS, 1.0 - EPS)
    return 1.0 - (1.0 - xc ** a) ** b


if __name__ == "__main__":
    key = jax.random.PRNGKey(0)
    # small NCHW input consistent with a wrapper applied to image-like data
    x = jax.random.uniform(key, (2, 4, 16, 16), dtype=jnp.float32)

    # deterministic parameter init matching nn.Parameter(torch.zeros(1))
    alpha_param = jnp.zeros((1,), jnp.float32)
    beta_param = jnp.zeros((1,), jnp.float32)

    # aligned f32 path: 2048 elems -> (16,128), single full-extent block
    out = jax.block_until_ready(kumar_forward(x, alpha_param, beta_param))
    ref = _ref_fn(x, alpha_param, beta_param)
    assert out.shape == x.shape and out.dtype == x.dtype
    assert float(jnp.max(jnp.abs(out - ref))) < 1e-5

    # ragged path: 2112 elems (not a 128 multiple) -> pad to 17 rows,
    # single full-extent (non-8-multiple) block
    x2 = jax.random.uniform(jax.random.PRNGKey(1), (2, 3, 16, 22), dtype=jnp.float32)
    out2 = jax.block_until_ready(kumar_forward(x2, alpha_param, beta_param))
    ref2 = _ref_fn(x2, alpha_param, beta_param)
    assert out2.shape == x2.shape
    assert float(jnp.max(jnp.abs(out2 - ref2))) < 1e-5

    # large ragged path: 530965 elems -> 4149 rows, 4-step grid with a
    # partial last block (exercises the multi-step + masked-tail path)
    x3 = jax.random.uniform(jax.random.PRNGKey(2), (515, 1031), dtype=jnp.float32)
    out3 = jax.block_until_ready(kumar_forward(x3, alpha_param, beta_param))
    ref3 = _ref_fn(x3, alpha_param, beta_param)
    assert out3.shape == x3.shape
    assert float(jnp.max(jnp.abs(out3 - ref3))) < 3e-5

    # bf16 I/O path: narrow HBM traffic; on v6e/v7x the transcendental chain
    # runs in bf16 (EUP-bound), elsewhere it falls back to f32 compute
    xb = x.astype(jnp.bfloat16)
    outb = jax.block_until_ready(kumar_forward(xb, alpha_param, beta_param))
    refb = _ref_fn(xb, alpha_param, beta_param)
    assert outb.dtype == jnp.bfloat16 and outb.shape == xb.shape
    assert float(jnp.max(jnp.abs(outb.astype(jnp.float32) - refb))) < 2e-2

    print("KERNEL_OK")
</pallas_src>

<mosaic_0001>
module attributes {stable_mosaic.version = 11 : i64} {
  func.func @kumar_kernel(%arg0: i32, %arg1: memref<2xf32, #tpu.memory_space<smem>>, %arg2: memref<16x128xf32, #tpu.memory_space<vmem>>, %arg3: memref<16x128xf32, #tpu.memory_space<vmem>>) attributes {dimension_semantics = [#tpu.dimension_semantics<parallel>], iteration_bounds = array<i64: 1>, scalar_prefetch = 0 : i64, scratch_operands = 0 : i64, tpu.core_type = #tpu.core_type<tc>, window_params = [{transform_indices = @transform_0, window_bounds = array<i64: 2>}, {transform_indices = @transform_1, window_bounds = array<i64: 16, 128>}, {transform_indices = @transform_2, window_bounds = array<i64: 16, 128>}]} {
    %c0 = arith.constant 0 : index
    %0 = memref.load %arg1[%c0] : memref<2xf32, #tpu.memory_space<smem>>
    %c1 = arith.constant 1 : index
    %1 = memref.load %arg1[%c1] : memref<2xf32, #tpu.memory_space<smem>>
    %c0_0 = arith.constant 0 : index
    %c0_1 = arith.constant 0 : index
    %2 = vector.load %arg2[%c0_0, %c0_1] : memref<16x128xf32, #tpu.memory_space<vmem>>, vector<16x128xf32>
    %cst = arith.constant 9.99999997E-7 : f32
    %cst_2 = arith.constant 0.999998986 : f32
    %3 = vector.broadcast %cst : f32 to vector<16x128xf32>
    %4 = arith.maximumf %3, %2 : vector<16x128xf32>
    %5 = vector.broadcast %cst_2 : f32 to vector<16x128xf32>
    %6 = arith.minimumf %5, %4 : vector<16x128xf32>
    %7 = math.log %6 : vector<16x128xf32>
    %8 = vector.broadcast %0 : f32 to vector<16x128xf32>
    %9 = arith.mulf %8, %7 : vector<16x128xf32>
    %10 = math.exp %9 : vector<16x128xf32>
    %cst_3 = arith.constant 1.000000e+00 : f32
    %11 = vector.broadcast %cst_3 : f32 to vector<16x128xf32>
    %12 = arith.minimumf %10, %11 : vector<16x128xf32>
    %cst_4 = arith.constant 0.000000e+00 : f32
    %13 = vector.broadcast %cst_4 : f32 to vector<16x128xf32>
    %14 = arith.subf %13, %12 : vector<16x128xf32>
    %15 = math.log1p %14 : vector<16x128xf32>
    %16 = vector.broadcast %1 : f32 to vector<16x128xf32>
    %17 = arith.mulf %16, %15 : vector<16x128xf32>
    %18 = math.exp %17 : vector<16x128xf32>
    %cst_5 = arith.constant 1.000000e+00 : f32
    %19 = vector.broadcast %cst_5 : f32 to vector<16x128xf32>
    %20 = arith.subf %19, %18 : vector<16x128xf32>
    %c0_6 = arith.constant 0 : index
    %c0_7 = arith.constant 0 : index
    %21 = vector.load %arg3[%c0_6, %c0_7] : memref<16x128xf32, #tpu.memory_space<vmem>>, vector<16x128xf32>
    tpu.vector_store %arg3[%c0_6, %c0_7], %20 {strides = array<i32>} : memref<16x128xf32, #tpu.memory_space<vmem>>, vector<16x128xf32>,
    return
  }
  func.func @transform_0(%arg0: i32) -> i32 {
    %c0_i32 = arith.constant 0 : i32
    %c0_i32_0 = arith.constant 0 : i32
    return %c0_i32 : i32
  }
  func.func @transform_1(%arg0: i32) -> (i32, i32) {
    %c0_i32 = arith.constant 0 : i32
    %c0_i32_0 = arith.constant 0 : i32
    return %arg0, %c0_i32 : i32, i32
  }
  func.func @transform_2(%arg0: i32) -> (i32, i32) {
    %c0_i32 = arith.constant 0 : i32
    %c0_i32_0 = arith.constant 0 : i32
    return %arg0, %c0_i32 : i32, i32
  }
}

</mosaic_0001>

<llo_original>
// kernel: tpu_custom_call.1
$region0: #{tpu_custom_call.1}
  #allocation0 [shape = 'u32[]', space=smem, size = 0x4, offset = 0x4, fixed_abs, tag = 'smem constant byte address 0x4 - core index']
  #allocation1 [shape = 'u32[72,128]{1,0:T(1,128)}', space=vmem, size = 0x9000, scoped, tag = 'internal scratch']
  %s0 = inlined_call_operand.hbm [shape: f32[2], index: 0, kind: input, shape index: {}]
  %s1 = inlined_call_operand.hbm [shape: f32[16,128], index: 1, kind: input, shape index: {}]
  %s2 = inlined_call_operand.hbm [shape: f32[16,128], index: 2, kind: output, shape index: {}]
  %s3 = sld [smem:[#allocation0]]
  $region26: #{tpu_custom_call.1} parent=0
    _
  %s5 = ssub.s32 1, %s3
  %s6 = scalar_select 0, %s5, %s3
  $region1: #{tpu_custom_call.1} parent=0
    #allocation2 [shape = 'u8[512]{0}', space=smem, size = 0x200, scoped, tag = 'input window, operand 0, single buffered']
    #allocation3 [shape = 's32[1]{0}', space=sflag, size = 0x4, scoped, tag = 'scoped memory for tpu_custom_call.1']
    #allocation4 [shape = 's32[1]{0}', space=sflag, size = 0x4, scoped, tag = 'scoped memory for tpu_custom_call.1']
    #allocation5 [shape = 's32[1]{0}', space=sflag, size = 0x4, scoped, tag = 'scoped memory for tpu_custom_call.1']
    #allocation6 [shape = 'u8[8192]{0}', space=vmem, size = 0x2000, scoped, tag = 'input window, operand 1, single buffered']
    #allocation7 [shape = 'u8[8192]{0}', space=vmem, size = 0x2000, scoped, tag = 'output window, operand 0, single buffered']
    %7 = vsyncpa [#allocation5], 0
    %8 = vsyncpa [#allocation3], 0
    %9 = vsyncpa [#allocation4], 0
    // Predicated region
    $region2: #{tpu_custom_call.1} parent=1 // pred_check
      _
    $region3: #{tpu_custom_call.1} parent=1 // pred_check_branch
      %11 = sbr.rel (0) target = $region5
    $region4: #{tpu_custom_call.1} parent=1 // pred_region
      %13 = vsyncadd [#allocation5], 0
      %s15 = sshll.u32 %s0, 4
      %s16 = int_to_ptr.hbm [resolvable:$true] %s15
      %18 = dma.hbm_to_smem %s16, 16, [#allocation2], [#allocation5]
    $region5: #{tpu_custom_call.1} parent=1 // pred_fallthru
      _
    // Predicated region
    $region6: #{tpu_custom_call.1} parent=1 // pred_check
      _
    $region7: #{tpu_custom_call.1} parent=1 // pred_check_branch
      %20 = sbr.rel (0) target = $region9
    $region8: #{tpu_custom_call.1} parent=1 // pred_region
      %22 = vsyncadd [#allocation3], 0
      %s23 = sshll.u32 %s1, 4
      %s24 = int_to_ptr.hbm [resolvable:$true] %s23
      %s25 = sshll.u32 [#allocation6], 4
      %s26 = int_to_ptr.vmem [resolvable:$true] %s25
      %31 = dma.hbm_to_vmem [thread:$0]  %s24, 256, %s26, [#allocation3], 128, 128, 8
    $region9: #{tpu_custom_call.1} parent=1 // pred_fallthru
      _
    // Predicated region
    $region10: #{tpu_custom_call.1} parent=1 // pred_check
      _
    $region11: #{tpu_custom_call.1} parent=1 // pred_check_branch
      %33 = sbr.rel (0) target = $region13
    $region12: #{tpu_custom_call.1} parent=1 // pred_region
      %35 = dma.done [#allocation5], 16
    $region13: #{tpu_custom_call.1} parent=1 // pred_fallthru
      _
    // Predicated region
    $region14: #{tpu_custom_call.1} parent=1 // pred_check
      _
    $region15: #{tpu_custom_call.1} parent=1 // pred_check_branch
      %37 = sbr.rel (0) target = $region17
    $region16: #{tpu_custom_call.1} parent=1 // pred_region
      %39 = dma.done [#allocation3], 256
    $region17: #{tpu_custom_call.1} parent=1 // pred_fallthru
      _
    %40 = sfence
    %s41 = sld [smem:[#allocation2]]
    %s42 = sld [smem:[#allocation2 + $0x1]]
    %v43 = vld [vmem:[#allocation6] sm:$0xff]
    %v44 = vld [vmem:[#allocation6 + $0x8] sm:$0xff]
    %v45 = vmax.f32 %v43, 1e-06
    %v46 = vmax.f32 %v44, 1e-06
    %v47 = vmin.f32 %v45, 0.999999
    %v48 = vmin.f32 %v46, 0.999999
    %v49 = vlog2.pop %v47
    %v50 = vmul.f32 %v49, 0.6931472
    %v51 = vlog2.pop %v48
    %v52 = vmul.f32 %v51, 0.6931472
    %v53 = vstv %s41
    %v54 = vmul.f32 %v53, %v50
    %v55 = vmul.f32 %v53, %v52
    %v56 = vmul.f32 %v54, 1.442695
    %v57 = vpow.pop %v56
    %v58 = vmul.f32 %v55, 1.442695
    %v59 = vpow.pop %v58
    %v60 = vmin.f32 %v57, 1.0
    %v61 = vmin.f32 %v59, 1.0
    %v62 = vsub.f32 0.0, %v60
    %v63 = vsub.f32 0.0, %v61
    %v64 = vadd.f32 %v62, 1.0
    %v65 = vlog2.pop %v64
    %v66 = vmul.f32 %v65, 0.6931472
    %v67 = vmul.f32 -0.5, %v62
    %v68 = vadd.f32 %v67, 1.0
    %v69 = vmul.f32 %v68, %v62
    %v70 = vand.u32 2147483647, %v62
    %vm71 = vcmp.lt.f32.partialorder %v70, 0.0004427343
    %v72 = vsel %vm71, %v69, %v66
    %v73 = vadd.f32 %v63, 1.0
    %v74 = vlog2.pop %v73
    %v75 = vmul.f32 %v74, 0.6931472
    %v76 = vmul.f32 -0.5, %v63
    %v77 = vadd.f32 %v76, 1.0
    %v78 = vmul.f32 %v77, %v63
    %v79 = vand.u32 2147483647, %v63
    %vm80 = vcmp.lt.f32.partialorder %v79, 0.0004427343
    %v81 = vsel %vm80, %v78, %v75
    %v82 = vstv %s42
    %v83 = vmul.f32 %v82, %v72
    %v84 = vmul.f32 %v82, %v81
    %v85 = vmul.f32 %v83, 1.442695
    %v86 = vpow.pop %v85
    %v87 = vmul.f32 %v84, 1.442695
    %v88 = vpow.pop %v87
    %v89 = vsub.f32 1.0, %v86
    %v90 = vsub.f32 1.0, %v88
    %91 = vst [vmem:[#allocation7] sm:$0xff] %v89
    %92 = vst [vmem:[#allocation7 + $0x8] sm:$0xff] %v90
    // Predicated region
    $region18: #{tpu_custom_call.1} parent=1 // pred_check
      _
    $region19: #{tpu_custom_call.1} parent=1 // pred_check_branch
      %94 = sbr.rel (0) target = $region21
    $region20: #{tpu_custom_call.1} parent=1 // pred_region
      %96 = vsyncadd [#allocation4], 0
      %s97 = sshll.u32 [#allocation7], 4
      %s98 = int_to_ptr.vmem [resolvable:$true] %s97
      %s99 = sshll.u32 %s2, 4
      %s100 = int_to_ptr.hbm [resolvable:$true] %s99
      %105 = dma.vmem_to_hbm [thread:$0]  %s98, 256, %s100, [#allocation4], 128, 128, 8
    $region21: #{tpu_custom_call.1} parent=1 // pred_fallthru
      _
    // Predicated region
    $region22: #{tpu_custom_call.1} parent=1 // pred_check
      _
    $region23: #{tpu_custom_call.1} parent=1 // pred_check_branch
      %107 = sbr.rel (0) target = $region25
    $region24: #{tpu_custom_call.1} parent=1 // pred_region
      %109 = dma.done [#allocation4], 256
    $region25: #{tpu_custom_call.1} parent=1 // pred_fallthru
      _
    %110 = vsyncpa [#allocation3], 1
    %111 = vsyncpa [#allocation4], 1
    %112 = vsyncpa [#allocation5], 1

</llo_original>
